<compile_context>
chip_gen: v6e
topology: v6e:2x2x1
jax: 0.10.0
libtpu: 0.0.40
codegen_flags: <defaults>
</compile_context>

<pallas_src>
import functools

import jax
import jax.numpy as jnp
import numpy as np
from jax import lax
from jax.experimental import pallas as pl
from jax.experimental.pallas import tpu as pltpu

NORM_EPS = 1e-5


def _round_up(x, m):
    return -(-x // m) * m


def _vmem_capacity_bytes():
    try:
        return int(pltpu.get_tpu_info().vmem_capacity_bytes)
    except Exception:
        return 128 << 20          # v5e / v6e default


def _choose_query_tile(n, num_heads, m_pad, attn_itemsize, budget_bytes):
    """Largest multiple-of-8 divisor of n whose (H, tile, m_pad) attn block fits."""
    if n <= 8:
        return n
    candidates = [t for t in range(8, n + 1, 8) if n % t == 0]
    if not candidates:
        return n                  # no 8-aligned divisor -> full extent (valid)
    fitting = [t for t in candidates
               if num_heads * t * m_pad * attn_itemsize <= budget_bytes]
    return max(fitting) if fitting else min(candidates)


def _esa_kernel(*refs, num_heads, head_dim, scale, tile_n, query_from_kv):
    # refs layout (query_from_kv=True, sr_ratio==1):
    #   xkv, Wq, bq, Wk, bk, Wv, bv, attn_out, v_out, k_scratch
    # refs layout (query_from_kv=False, sr_ratio>1): x tile prepended.
    if query_from_kv:
        (xkv_ref, wq_ref, bq_ref, wk_ref, bk_ref, wv_ref, bv_ref,
         attn_ref, v_ref, k_scratch) = refs
    else:
        (x_ref, xkv_ref, wq_ref, bq_ref, wk_ref, bk_ref, wv_ref, bv_ref,
         attn_ref, v_ref, k_scratch) = refs

    nt = pl.program_id(1)
    cdt = k_scratch.dtype         # compute dtype (bf16 fast path / f32 exact path)

    # k / v depend only on the batch element: compute them once per batch
    # (first query tile; the n axis is sequential / "arbitrary").  k is kept
    # resident in VMEM scratch pre-split into head-major (H, M, d) form so the
    # per-tile head loop reads clean slabs instead of re-slicing 16-lane chunks
    # out of (M, C) for every query tile.
    @pl.when(nt == 0)
    def _():
        xkv = xkv_ref[0]                                            # (M, C)
        k = jnp.dot(xkv, wk_ref[...],
                    preferred_element_type=jnp.float32) + bk_ref[...]
        v = jnp.dot(xkv, wv_ref[...],
                    preferred_element_type=jnp.float32) + bv_ref[...]
        v_ref[0] = v.astype(v_ref.dtype)
        k = k.astype(cdt)
        for h in range(num_heads):                     # once per batch element
            k_scratch[h] = k[:, h * head_dim:(h + 1) * head_dim]

    if query_from_kv:
        # sr_ratio == 1: the query tokens ARE x_kv -- slice the query tile out
        # of the already-resident VMEM block (no second HBM stream of x).
        start = pl.multiple_of(nt * tile_n, tile_n)
        x = xkv_ref[0, pl.ds(start, tile_n), :]                     # (tN, C)
    else:
        x = x_ref[0]                                                # (tN, C)

    q = jnp.dot(x, wq_ref[...],
                preferred_element_type=jnp.float32) + bq_ref[...]
    q = (q * scale).astype(cdt)          # fold the softmax scale into q once

    # Per-head q_h @ k_h^T in NT form (contract last dims) -- no in-kernel
    # transpose; each store is a full-width lane-dense (tN, M) slab.
    dn = (((1,), (1,)), ((), ()))
    for h in range(num_heads):                      # static unroll, H is small
        qh = q[:, h * head_dim:(h + 1) * head_dim]                  # (tN, d)
        kh = k_scratch[h]                                           # (M, d)
        attn_ref[0, h] = lax.dot_general(
            qh, kh, dimension_numbers=dn,
            preferred_element_type=jnp.float32).astype(attn_ref.dtype)


def esa_forward(x, params, *, head_dim=16, sr_ratio=1, qk_scale=None,
                attn_dtype=jnp.bfloat16, compute_dtype=jnp.bfloat16,
                query_tile=None):
    B, N, C = x.shape
    assert C % head_dim == 0
    num_heads = C // head_dim
    scale = float(qk_scale) if qk_scale is not None else head_dim ** (-0.5)
    cdt = jnp.dtype(compute_dtype)
    attn_dtype = jnp.dtype(attn_dtype)

    if sr_ratio > 1:
        # ---- glue (plain JAX): AvgPool1d over sequence + BatchNorm1d (training
        # mode batch statistics, eps=NORM_EPS, gamma/beta params). ----
        n_ratio = sr_ratio ** 2
        M = N // n_ratio
        x_ = x[:, : M * n_ratio, :].reshape(B, M, n_ratio, C).mean(axis=2)
        mean = x_.mean(axis=(0, 1), keepdims=True)
        var = x_.var(axis=(0, 1), keepdims=True)              # biased, as in BN
        x_ = (x_ - mean) / jnp.sqrt(var + NORM_EPS)
        x_kv = x_ * params["bn_gamma"] + params["bn_beta"]
        query_from_kv = False
    else:
        x_kv = x
        query_from_kv = True
    M = x_kv.shape[1]

    # Cast streamed operands to the compute dtype (bf16 fast path: halves
    # weight / activation DMA and cuts MXU passes; f32 accumulation kept).
    x_kv = x_kv.astype(cdt)
    wq = params["wq"].astype(cdt)
    wk = params["wk"].astype(cdt)
    wv = params["wv"].astype(cdt)
    bq = params["bq"].astype(jnp.float32)
    bk = params["bk"].astype(jnp.float32)
    bv = params["bv"].astype(jnp.float32)

    # ---- generation-aware budgets -------------------------------------------
    vmem_cap = _vmem_capacity_bytes()
    if vmem_cap <= (64 << 20):            # v7x-class: 64 MiB VMEM per TC
        attn_tile_budget = 6 << 20
        vmem_ceiling = 52 << 20
    else:                                 # v5e / v6e: 128 MiB VMEM
        attn_tile_budget = 16 << 20
        vmem_ceiling = 100 << 20

    attn_itemsize = attn_dtype.itemsize
    cbytes = cdt.itemsize
    m_pad = _round_up(M, 128)             # lane padding of the attn last dim
    c_pad = _round_up(C, 128)
    m_row = _round_up(M, 8)

    if query_tile is not None:
        assert N % query_tile == 0 and (query_tile % 8 == 0 or query_tile == N)
        tN = query_tile
    else:
        tN = _choose_query_tile(N, num_heads, m_pad, attn_itemsize,
                                attn_tile_budget)
    n_tiles = N // tN
    tn_pad = _round_up(tN, 8)

    # Conservative VMEM estimate (double-buffer everything the pipeline might).
    vmem_est = (
        2 * m_row * c_pad * cbytes                                  # x_kv block
        + (0 if query_from_kv else 2 * tn_pad * c_pad * cbytes)     # x tile
        + 2 * 3 * _round_up(C, 8) * c_pad * cbytes                  # Wq/Wk/Wv
        + 2 * 3 * 8 * c_pad * 4                                     # biases (f32)
        + 2 * num_heads * tn_pad * m_pad * attn_itemsize            # attn tile
        + 2 * m_row * c_pad * 4                                     # v out
        + num_heads * m_row * 128 * cbytes)                         # k scratch (lane-padded)
    vmem_limit = int(min(max(vmem_est * 1.25 + (2 << 20), 32 << 20), vmem_ceiling))

    kernel = functools.partial(
        _esa_kernel, num_heads=num_heads, head_dim=head_dim, scale=scale,
        tile_n=tN, query_from_kv=query_from_kv)

    in_specs = []
    inputs = []
    if not query_from_kv:
        in_specs.append(pl.BlockSpec((1, tN, C), lambda b, n: (b, n, 0)))  # x (query tiles)
        inputs.append(x.astype(cdt))
    in_specs += [
        pl.BlockSpec((1, M, C), lambda b, n: (b, 0, 0)),    # x_kv (per batch)
        pl.BlockSpec((C, C), lambda b, n: (0, 0)),          # Wq
        pl.BlockSpec((1, C), lambda b, n: (0, 0)),          # bq
        pl.BlockSpec((C, C), lambda b, n: (0, 0)),          # Wk
        pl.BlockSpec((1, C), lambda b, n: (0, 0)),          # bk
        pl.BlockSpec((C, C), lambda b, n: (0, 0)),          # Wv
        pl.BlockSpec((1, C), lambda b, n: (0, 0)),          # bv
    ]
    inputs += [x_kv, wq, bq, wk, bk, wv, bv]

    attn, v = pl.pallas_call(
        kernel,
        out_shape=(
            jax.ShapeDtypeStruct((B, num_heads, N, M), attn_dtype),
            jax.ShapeDtypeStruct((B, M, C), jnp.float32),
        ),
        grid_spec=pltpu.PrefetchScalarGridSpec(
            num_scalar_prefetch=0,
            grid=(B, n_tiles),
            in_specs=in_specs,
            out_specs=[
                pl.BlockSpec((1, num_heads, tN, M), lambda b, n: (b, 0, n, 0)),  # attn
                pl.BlockSpec((1, M, C), lambda b, n: (b, 0, 0)),                 # v
            ],
            # k scratch, head-major: filled once per batch element, read per tile.
            scratch_shapes=[pltpu.VMEM((num_heads, M, head_dim), cdt)],
        ),
        compiler_params=pltpu.CompilerParams(
            # NOTE: the n axis MUST stay sequential ("arbitrary") -- k_scratch /
            # the v output are produced only at nt == 0 and reused across tiles.
            dimension_semantics=("parallel", "arbitrary"),
            vmem_limit_bytes=vmem_limit),
    )(*inputs)
    return attn, v


def esa_reference(x, params, *, head_dim=16, sr_ratio=1, qk_scale=None):
    """Plain-JAX reference mirroring the PyTorch forward (f32 throughout)."""
    B, N, C = x.shape
    num_heads = C // head_dim
    scale = float(qk_scale) if qk_scale is not None else head_dim ** (-0.5)
    q = x @ params["wq"] + params["bq"][0]
    q = q.reshape(B, N, num_heads, head_dim).transpose(0, 2, 1, 3)     # (B,H,N,d)
    if sr_ratio > 1:
        n_ratio = sr_ratio ** 2
        M = N // n_ratio
        x_ = x[:, : M * n_ratio, :].reshape(B, M, n_ratio, C).mean(axis=2)
        mean = x_.mean(axis=(0, 1), keepdims=True)
        var = x_.var(axis=(0, 1), keepdims=True)
        x_ = (x_ - mean) / jnp.sqrt(var + NORM_EPS)
        x_kv = x_ * params["bn_gamma"] + params["bn_beta"]
    else:
        x_kv = x
    M = x_kv.shape[1]
    k = x_kv @ params["wk"] + params["bk"][0]
    k = k.reshape(B, M, num_heads, head_dim).transpose(0, 2, 3, 1)     # (B,H,d,M)
    v = x_kv @ params["wv"] + params["bv"][0]                          # (B,M,C)
    attn = jnp.einsum("bhnd,bhdm->bhnm", q, k) * scale
    return attn, v


def init_params(key, dim):
    """Deterministic synthetic parameters (PyTorch Linear shapes, pre-transposed)."""
    ks = jax.random.split(key, 6)
    s = 1.0 / np.sqrt(dim)
    return {
        "wq": jax.random.uniform(ks[0], (dim, dim), jnp.float32, -s, s),
        "bq": jax.random.uniform(ks[1], (1, dim), jnp.float32, -s, s),
        "wk": jax.random.uniform(ks[2], (dim, dim), jnp.float32, -s, s),
        "bk": jax.random.uniform(ks[3], (1, dim), jnp.float32, -s, s),
        "wv": jax.random.uniform(ks[4], (dim, dim), jnp.float32, -s, s),
        "bv": jax.random.uniform(ks[5], (1, dim), jnp.float32, -s, s),
        # BatchNorm1d params (only used when sr_ratio > 1); default init.
        "bn_gamma": jnp.ones((1, 1, dim), jnp.float32),
        "bn_beta": jnp.zeros((1, 1, dim), jnp.float32),
        # self.proj / dropouts are defined in __init__ but unused in forward().
    }


if __name__ == "__main__":
    head_dim = 16
    B, N, C = 2, 64, 32          # dim=32, head_dim=16 -> num_heads=2

    key = jax.random.PRNGKey(0)
    kx, kp = jax.random.split(key)
    x = jax.random.normal(kx, (B, N, C), jnp.float32)
    params = init_params(kp, C)

    # Reference (f32, matches the PyTorch forward).
    attn_ref, v_ref = esa_reference(x, params, head_dim=head_dim, sr_ratio=1)

    # 1) Exact path: f32 compute + f32 attn output.
    attn, v = esa_forward(x, params, head_dim=head_dim, sr_ratio=1,
                          attn_dtype=jnp.float32, compute_dtype=jnp.float32)
    jax.block_until_ready((attn, v))
    np.testing.assert_allclose(np.asarray(attn), np.asarray(attn_ref),
                               rtol=1e-5, atol=1e-5)
    np.testing.assert_allclose(np.asarray(v), np.asarray(v_ref),
                               rtol=1e-5, atol=1e-5)

    # 2) Fast path (defaults): bf16 weights/q/k + bf16 attn writeback, forced
    #    multi-tile query axis to exercise resident-k + query-from-kv slicing.
    attn_b, v_b = esa_forward(x, params, head_dim=head_dim, sr_ratio=1,
                              query_tile=16)
    jax.block_until_ready((attn_b, v_b))
    np.testing.assert_allclose(np.asarray(attn_b.astype(jnp.float32)),
                               np.asarray(attn_ref), rtol=2e-2, atol=2e-2)
    np.testing.assert_allclose(np.asarray(v_b), np.asarray(v_ref),
                               rtol=2e-2, atol=2e-2)

    # 3) sr_ratio > 1 path (AvgPool + BatchNorm glue in JAX, separate query stream).
    attn_s, v_s = esa_forward(x, params, head_dim=head_dim, sr_ratio=2,
                              attn_dtype=jnp.float32, compute_dtype=jnp.float32)
    jax.block_until_ready((attn_s, v_s))
    attn_sr, v_sr = esa_reference(x, params, head_dim=head_dim, sr_ratio=2)
    np.testing.assert_allclose(np.asarray(attn_s), np.asarray(attn_sr),
                               rtol=1e-5, atol=1e-5)
    np.testing.assert_allclose(np.asarray(v_s), np.asarray(v_sr),
                               rtol=1e-5, atol=1e-5)

    print("KERNEL_OK")
</pallas_src>

<mosaic_0001>
module attributes {stable_mosaic.version = 11 : i64} {
  func.func @_esa_kernel(%arg0: i32, %arg1: i32, %arg2: memref<1x64x32xf32, #tpu.memory_space<vmem>>, %arg3: memref<32x32xf32, #tpu.memory_space<vmem>>, %arg4: memref<1x32xf32, #tpu.memory_space<vmem>>, %arg5: memref<32x32xf32, #tpu.memory_space<vmem>>, %arg6: memref<1x32xf32, #tpu.memory_space<vmem>>, %arg7: memref<32x32xf32, #tpu.memory_space<vmem>>, %arg8: memref<1x32xf32, #tpu.memory_space<vmem>>, %arg9: memref<1x2x64x64xf32, #tpu.memory_space<vmem>>, %arg10: memref<1x64x32xf32, #tpu.memory_space<vmem>>, %arg11: memref<2x64x16xf32, #tpu.memory_space<vmem>>) attributes {dimension_semantics = [#tpu.dimension_semantics<parallel>, #tpu.dimension_semantics<arbitrary>], iteration_bounds = array<i64: 2, 1>, scalar_prefetch = 0 : i64, scratch_operands = 1 : i64, tpu.core_type = #tpu.core_type<tc>, window_params = [{transform_indices = @transform_0, window_bounds = array<i64: 1, 64, 32>}, {pipeline_mode = #tpu.pipeline_mode<synchronous>, transform_indices = @transform_1, window_bounds = array<i64: 32, 32>}, {pipeline_mode = #tpu.pipeline_mode<synchronous>, transform_indices = @transform_2, window_bounds = array<i64: 1, 32>}, {pipeline_mode = #tpu.pipeline_mode<synchronous>, transform_indices = @transform_3, window_bounds = array<i64: 32, 32>}, {pipeline_mode = #tpu.pipeline_mode<synchronous>, transform_indices = @transform_4, window_bounds = array<i64: 1, 32>}, {pipeline_mode = #tpu.pipeline_mode<synchronous>, transform_indices = @transform_5, window_bounds = array<i64: 32, 32>}, {pipeline_mode = #tpu.pipeline_mode<synchronous>, transform_indices = @transform_6, window_bounds = array<i64: 1, 32>}, {transform_indices = @transform_7, window_bounds = array<i64: 1, 2, 64, 64>}, {transform_indices = @transform_8, window_bounds = array<i64: 1, 64, 32>}]} {
    %c0_i32 = arith.constant 0 : i32
    %0 = arith.cmpi eq, %arg1, %c0_i32 : i32
    %1 = arith.extui %0 : i1 to i32
    %c0_i32_0 = arith.constant 0 : i32
    %2 = arith.cmpi ne, %1, %c0_i32_0 : i32
    scf.if %2 {
      %c0_22 = arith.constant 0 : index
      %c0_23 = arith.constant 0 : index
      %c0_24 = arith.constant 0 : index
      %29 = vector.load %arg2[%c0_22, %c0_23, %c0_24] : memref<1x64x32xf32, #tpu.memory_space<vmem>>, vector<1x64x32xf32>
      %30 = vector.shape_cast %29 : vector<1x64x32xf32> to vector<64x32xf32>
      %c0_25 = arith.constant 0 : index
      %c0_26 = arith.constant 0 : index
      %31 = vector.load %arg5[%c0_25, %c0_26] : memref<32x32xf32, #tpu.memory_space<vmem>>, vector<32x32xf32>
      %cst_27 = arith.constant dense<0.000000e+00> : vector<64x32xf32>
      %32 = tpu.matmul %30, %31, %cst_27 {dimension_numbers = #tpu.dot_dimension_numbers<[1], [0], [0], [1], [0, 0, 1, 1], [], []>} : vector<64x32xf32>, vector<32x32xf32>, vector<64x32xf32> -> vector<64x32xf32>
      %c0_28 = arith.constant 0 : index
      %c0_29 = arith.constant 0 : index
      %33 = vector.load %arg6[%c0_28, %c0_29] : memref<1x32xf32, #tpu.memory_space<vmem>>, vector<1x32xf32>
      %34 = vector.broadcast %33 : vector<1x32xf32> to vector<64x32xf32>
      %35 = arith.addf %32, %34 : vector<64x32xf32>
      %c0_30 = arith.constant 0 : index
      %c0_31 = arith.constant 0 : index
      %36 = vector.load %arg7[%c0_30, %c0_31] : memref<32x32xf32, #tpu.memory_space<vmem>>, vector<32x32xf32>
      %cst_32 = arith.constant dense<0.000000e+00> : vector<64x32xf32>
      %37 = tpu.matmul %30, %36, %cst_32 {dimension_numbers = #tpu.dot_dimension_numbers<[1], [0], [0], [1], [0, 0, 1, 1], [], []>} : vector<64x32xf32>, vector<32x32xf32>, vector<64x32xf32> -> vector<64x32xf32>
      %c0_33 = arith.constant 0 : index
      %c0_34 = arith.constant 0 : index
      %38 = vector.load %arg8[%c0_33, %c0_34] : memref<1x32xf32, #tpu.memory_space<vmem>>, vector<1x32xf32>
      %39 = vector.broadcast %38 : vector<1x32xf32> to vector<64x32xf32>
      %40 = arith.addf %37, %39 : vector<64x32xf32>
      %c0_35 = arith.constant 0 : index
      %c0_36 = arith.constant 0 : index
      %c0_37 = arith.constant 0 : index
      %41 = vector.load %arg10[%c0_35, %c0_36, %c0_37] : memref<1x64x32xf32, #tpu.memory_space<vmem>>, vector<1x64x32xf32>
      %42 = vector.shape_cast %41 : vector<1x64x32xf32> to vector<64x32xf32>
      %43 = vector.shape_cast %40 : vector<64x32xf32> to vector<1x64x32xf32>
      tpu.vector_store %arg10[%c0_35, %c0_36, %c0_37], %43 {strides = array<i32>} : memref<1x64x32xf32, #tpu.memory_space<vmem>>, vector<1x64x32xf32>,
      %44 = vector.extract_strided_slice %35 {offsets = [0, 0], sizes = [64, 16], strides = [1, 1]} : vector<64x32xf32> to vector<64x16xf32>
      %c0_38 = arith.constant 0 : index
      %c0_39 = arith.constant 0 : index
      %c0_40 = arith.constant 0 : index
      %45 = vector.load %arg11[%c0_38, %c0_39, %c0_40] : memref<2x64x16xf32, #tpu.memory_space<vmem>>, vector<1x64x16xf32>
      %46 = vector.shape_cast %45 : vector<1x64x16xf32> to vector<64x16xf32>
      %47 = vector.shape_cast %44 : vector<64x16xf32> to vector<1x64x16xf32>
      tpu.vector_store %arg11[%c0_38, %c0_39, %c0_40], %47 {strides = array<i32>} : memref<2x64x16xf32, #tpu.memory_space<vmem>>, vector<1x64x16xf32>,
      %48 = vector.extract_strided_slice %35 {offsets = [0, 16], sizes = [64, 16], strides = [1, 1]} : vector<64x32xf32> to vector<64x16xf32>
      %c1_41 = arith.constant 1 : index
      %c0_42 = arith.constant 0 : index
      %c0_43 = arith.constant 0 : index
      %49 = vector.load %arg11[%c1_41, %c0_42, %c0_43] : memref<2x64x16xf32, #tpu.memory_space<vmem>>, vector<1x64x16xf32>
      %50 = vector.shape_cast %49 : vector<1x64x16xf32> to vector<64x16xf32>
      %51 = vector.shape_cast %48 : vector<64x16xf32> to vector<1x64x16xf32>
      tpu.vector_store %arg11[%c1_41, %c0_42, %c0_43], %51 {strides = array<i32>} : memref<2x64x16xf32, #tpu.memory_space<vmem>>, vector<1x64x16xf32>,
    } else {
    }
    %c64_i32 = arith.constant 64 : i32
    %3 = arith.muli %arg1, %c64_i32 : i32
    %4 = tpu.assume_multiple %3, 64 : i32
    %c0 = arith.constant 0 : index
    %5 = arith.index_cast %4 : i32 to index
    %c0_1 = arith.constant 0 : index
    %6 = vector.load %arg2[%c0, %5, %c0_1] : memref<1x64x32xf32, #tpu.memory_space<vmem>>, vector<1x64x32xf32>
    %7 = vector.shape_cast %6 : vector<1x64x32xf32> to vector<64x32xf32>
    %c0_2 = arith.constant 0 : index
    %c0_3 = arith.constant 0 : index
    %8 = vector.load %arg3[%c0_2, %c0_3] : memref<32x32xf32, #tpu.memory_space<vmem>>, vector<32x32xf32>
    %cst = arith.constant dense<0.000000e+00> : vector<64x32xf32>
    %9 = tpu.matmul %7, %8, %cst {dimension_numbers = #tpu.dot_dimension_numbers<[1], [0], [0], [1], [0, 0, 1, 1], [], []>} : vector<64x32xf32>, vector<32x32xf32>, vector<64x32xf32> -> vector<64x32xf32>
    %c0_4 = arith.constant 0 : index
    %c0_5 = arith.constant 0 : index
    %10 = vector.load %arg4[%c0_4, %c0_5] : memref<1x32xf32, #tpu.memory_space<vmem>>, vector<1x32xf32>
    %11 = vector.broadcast %10 : vector<1x32xf32> to vector<64x32xf32>
    %12 = arith.addf %9, %11 : vector<64x32xf32>
    %cst_6 = arith.constant 2.500000e-01 : f32
    %13 = vector.broadcast %cst_6 : f32 to vector<64x32xf32>
    %14 = arith.mulf %12, %13 : vector<64x32xf32>
    %15 = vector.extract_strided_slice %14 {offsets = [0, 0], sizes = [64, 16], strides = [1, 1]} : vector<64x32xf32> to vector<64x16xf32>
    %c0_7 = arith.constant 0 : index
    %c0_8 = arith.constant 0 : index
    %c0_9 = arith.constant 0 : index
    %16 = vector.load %arg11[%c0_7, %c0_8, %c0_9] : memref<2x64x16xf32, #tpu.memory_space<vmem>>, vector<1x64x16xf32>
    %17 = vector.shape_cast %16 : vector<1x64x16xf32> to vector<64x16xf32>
    %cst_10 = arith.constant dense<0.000000e+00> : vector<64x64xf32>
    %18 = tpu.matmul %15, %17, %cst_10 {dimension_numbers = #tpu.dot_dimension_numbers<[1], [1], [0], [0], [0, 0, 1, 0], [], []>} : vector<64x16xf32>, vector<64x16xf32>, vector<64x64xf32> -> vector<64x64xf32>
    %c0_11 = arith.constant 0 : index
    %c0_12 = arith.constant 0 : index
    %c0_13 = arith.constant 0 : index
    %c0_14 = arith.constant 0 : index
    %19 = vector.load %arg9[%c0_11, %c0_12, %c0_13, %c0_14] : memref<1x2x64x64xf32, #tpu.memory_space<vmem>>, vector<1x1x64x64xf32>
    %20 = vector.shape_cast %19 : vector<1x1x64x64xf32> to vector<64x64xf32>
    %21 = vector.shape_cast %18 : vector<64x64xf32> to vector<1x1x64x64xf32>
    tpu.vector_store %arg9[%c0_11, %c0_12, %c0_13, %c0_14], %21 {strides = array<i32>} : memref<1x2x64x64xf32, #tpu.memory_space<vmem>>, vector<1x1x64x64xf32>,
    %22 = vector.extract_strided_slice %14 {offsets = [0, 16], sizes = [64, 16], strides = [1, 1]} : vector<64x32xf32> to vector<64x16xf32>
    %c1 = arith.constant 1 : index
    %c0_15 = arith.constant 0 : index
    %c0_16 = arith.constant 0 : index
    %23 = vector.load %arg11[%c1, %c0_15, %c0_16] : memref<2x64x16xf32, #tpu.memory_space<vmem>>, vector<1x64x16xf32>
    %24 = vector.shape_cast %23 : vector<1x64x16xf32> to vector<64x16xf32>
    %cst_17 = arith.constant dense<0.000000e+00> : vector<64x64xf32>
    %25 = tpu.matmul %22, %24, %cst_17 {dimension_numbers = #tpu.dot_dimension_numbers<[1], [1], [0], [0], [0, 0, 1, 0], [], []>} : vector<64x16xf32>, vector<64x16xf32>, vector<64x64xf32> -> vector<64x64xf32>
    %c0_18 = arith.constant 0 : index
    %c1_19 = arith.constant 1 : index
    %c0_20 = arith.constant 0 : index
    %c0_21 = arith.constant 0 : index
    %26 = vector.load %arg9[%c0_18, %c1_19, %c0_20, %c0_21] : memref<1x2x64x64xf32, #tpu.memory_space<vmem>>, vector<1x1x64x64xf32>
    %27 = vector.shape_cast %26 : vector<1x1x64x64xf32> to vector<64x64xf32>
    %28 = vector.shape_cast %25 : vector<64x64xf32> to vector<1x1x64x64xf32>
    tpu.vector_store %arg9[%c0_18, %c1_19, %c0_20, %c0_21], %28 {strides = array<i32>} : memref<1x2x64x64xf32, #tpu.memory_space<vmem>>, vector<1x1x64x64xf32>,
    return
  }
  func.func @transform_0(%arg0: i32, %arg1: i32) -> (i32, i32, i32) {
    %c0_i32 = arith.constant 0 : i32
    %c0_i32_0 = arith.constant 0 : i32
    %c0_i32_1 = arith.constant 0 : i32
    return %arg0, %c0_i32, %c0_i32_0 : i32, i32, i32
  }
  func.func @transform_1(%arg0: i32, %arg1: i32) -> (i32, i32) {
    %c0_i32 = arith.constant 0 : i32
    %c0_i32_0 = arith.constant 0 : i32
    %c0_i32_1 = arith.constant 0 : i32
    return %c0_i32, %c0_i32_0 : i32, i32
  }
  func.func @transform_2(%arg0: i32, %arg1: i32) -> (i32, i32) {
    %c0_i32 = arith.constant 0 : i32
    %c0_i32_0 = arith.constant 0 : i32
    %c0_i32_1 = arith.constant 0 : i32
    return %c0_i32, %c0_i32_0 : i32, i32
  }
  func.func @transform_3(%arg0: i32, %arg1: i32) -> (i32, i32) {
    %c0_i32 = arith.constant 0 : i32
    %c0_i32_0 = arith.constant 0 : i32
    %c0_i32_1 = arith.constant 0 : i32
    return %c0_i32, %c0_i32_0 : i32, i32
  }
  func.func @transform_4(%arg0: i32, %arg1: i32) -> (i32, i32) {
    %c0_i32 = arith.constant 0 : i32
    %c0_i32_0 = arith.constant 0 : i32
    %c0_i32_1 = arith.constant 0 : i32
    return %c0_i32, %c0_i32_0 : i32, i32
  }
  func.func @transform_5(%arg0: i32, %arg1: i32) -> (i32, i32) {
    %c0_i32 = arith.constant 0 : i32
    %c0_i32_0 = arith.constant 0 : i32
    %c0_i32_1 = arith.constant 0 : i32
    return %c0_i32, %c0_i32_0 : i32, i32
  }
  func.func @transform_6(%arg0: i32, %arg1: i32) -> (i32, i32) {
    %c0_i32 = arith.constant 0 : i32
    %c0_i32_0 = arith.constant 0 : i32
    %c0_i32_1 = arith.constant 0 : i32
    return %c0_i32, %c0_i32_0 : i32, i32
  }
  func.func @transform_7(%arg0: i32, %arg1: i32) -> (i32, i32, i32, i32) {
    %c0_i32 = arith.constant 0 : i32
    %c0_i32_0 = arith.constant 0 : i32
    %c0_i32_1 = arith.constant 0 : i32
    return %arg0, %c0_i32, %arg1, %c0_i32_0 : i32, i32, i32, i32
  }
  func.func @transform_8(%arg0: i32, %arg1: i32) -> (i32, i32, i32) {
    %c0_i32 = arith.constant 0 : i32
    %c0_i32_0 = arith.constant 0 : i32
    %c0_i32_1 = arith.constant 0 : i32
    return %arg0, %c0_i32, %c0_i32_0 : i32, i32, i32
  }
}

</mosaic_0001>

<llo_original>
// kernel: tpu_custom_call.1
$region0: #{tpu_custom_call.1}
  #allocation0 [shape = 'u32[]', space=smem, size = 0x4, offset = 0x4, fixed_abs, tag = 'smem constant byte address 0x4 - core index']
  #allocation1 [shape = 'u32[144,128]{1,0:T(1,128)}', space=vmem, size = 0x12000, scoped, tag = 'internal scratch']
  #allocation2 [shape = 'f32[2,64,16]{2,1,0:T(8,128)}', space=vmem, size = 0x10000, scoped, tag = 'scratch operand']
  %s0 = inlined_call_operand.vmem [shape: f32[2,64,32], index: 0, kind: input, shape index: {}]
  %s1 = inlined_call_operand.vmem [shape: f32[32,32], index: 1, kind: input, shape index: {}]
  %s2 = inlined_call_operand.vmem [shape: f32[1,32], index: 2, kind: input, shape index: {}]
  %s3 = inlined_call_operand.vmem [shape: f32[32,32], index: 3, kind: input, shape index: {}]
  %s4 = inlined_call_operand.vmem [shape: f32[1,32], index: 4, kind: input, shape index: {}]
  %s5 = inlined_call_operand.vmem [shape: f32[32,32], index: 5, kind: input, shape index: {}]
  %s6 = inlined_call_operand.vmem [shape: f32[1,32], index: 6, kind: input, shape index: {}]
  %s7 = inlined_call_operand.hbm [shape: f32[2,2,64,64], index: 7, kind: output, shape index: {0}]
  %s8 = inlined_call_operand.vmem [shape: f32[2,64,32], index: 8, kind: output, shape index: {1}]
  %9 = xla_tuple %s7, %s8
  %s10 = sld [smem:[#allocation0]]
  $region73: #{tpu_custom_call.1} parent=0
    _
  %s12 = ssub.s32 1, %s10
  %s13 = scalar_select 0, %s12, %s10
  $region1: #{tpu_custom_call.1} parent=0
    #allocation3 [shape = 'u8[131072]{0}', space=vmem, size = 0x20000, scoped, tag = 'output window, operand 0']
    #allocation4 [shape = 's32[2]{0}', space=sflag, size = 0x8, scoped, tag = 'scoped memory for tpu_custom_call.1']
    %14 = vsyncpa [#allocation4], 0
    %s15 = scalar_lea.sflag [#allocation4], 1
    %16 = vsyncpa %s15, 0
    loop: start=0, step=1, limit=4
    $region2: #{tpu_custom_call.1} parent=1 // loop_pre_header
      _
    $region3: #{tpu_custom_call.1} parent=1 // loop_header
      %s18 = sphi 0, %s22
      %p19 = scmp.ge.s32.totalorder %s18, 4
      %s25 = sphi 0, %s37
      %s26 = sphi 0, %s33
      %s27 = sphi 0, %s25
      %s28 = sphi 0, %s26
      %s29 = sphi 0, %s27
      %s30 = sphi 0, %s28
      %s40 = sphi 0, %s42
      %s43 = sphi 0, %s40
      %s44 = sphi 0, %s43
      %s60 = sphi 0, %s44
      %s64 = sphi 0, %s64
      %s66 = sphi 0, %s64
      %s67 = sphi 0, %s66
      %s81 = sphi 0, %s67
      %s85 = sphi 0, %s85
      %s87 = sphi 0, %s85
      %s88 = sphi 0, %s87
      %s102 = sphi 0, %s88
      %s106 = sphi 0, %s106
      %s108 = sphi 0, %s106
      %s109 = sphi 0, %s108
      %s123 = sphi 0, %s109
      %s127 = sphi 0, %s127
      %s129 = sphi 0, %s127
      %s130 = sphi 0, %s129
      %s144 = sphi 0, %s130
      %s148 = sphi 0, %s148
      %s150 = sphi 0, %s148
      %s151 = sphi 0, %s150
      %s165 = sphi 0, %s151
      %s169 = sphi 0, %s169
      %s171 = sphi 0, %s169
      %s172 = sphi 0, %s171
      %s186 = sphi 0, %s172
      %s194 = sphi 0, %s196
      %s197 = sphi 0, %s194
      %s198 = sphi 0, %s197
      %s214 = sphi 0, %s198
      %s220 = sphi 0, %s222
      %s223 = sphi 0, %s220
      %s224 = sphi 0, %s223
      %s240 = sphi 0, %s224
    $region4: #{tpu_custom_call.1} parent=1 // loop_header_branch
      %21 = sbr.rel (%p19) target = $region8
    $region5: #{tpu_custom_call.1} parent=1 // loop_body
      %s23 = ssub.s32 %s18, 1
      %s24 = ssub.s32 %s18, 2
      %s31 = sadd.s32 1, %s26
      %p32 = scmp.ge.s32.totalorder %s31, 1
      %s33 = scalar_select %p32, 0, %s31
      %s34 = sadd.s32 1, %s25
      %s35 = scalar_select %p32, %s34, %s25
      %p36 = scmp.ge.s32.totalorder %s35, 2
      %s37 = scalar_select %p36, 0, %s35
      %s38 = ssub.s32 %s25, %s37
      %p39 = scmp.eq.s32.totalorder %s38, 0
      %s41 = sadd.s32 %s40, 1
      %s42 = scalar_select %p39, %s40, %s41
      %p45 = pneg %p39
      %p46 = scmp.eq.s32.totalorder %s18, 1
      %p47 = por %p45, %p46
      %p48 = scmp.ne.s32.totalorder %s40, %s43
      %p49 = scmp.eq.s32.totalorder %s18, 0
      %p50 = por %p48, %p49
      %p51 = scmp.ne.s32.totalorder %s40, %s43
      %p52 = scmp.eq.s32.totalorder %s23, 1
      %p53 = por %p51, %p52
      %p54 = scmp.ne.s32.totalorder %s43, %s44
      %p55 = scmp.eq.s32.totalorder %s23, 0
      %p56 = por %p54, %p55
      %p57 = scmp.ne.s32.totalorder %s43, %s44
      %p58 = scmp.eq.s32.totalorder %s24, 1
      %p59 = por %p57, %p58
      %p61 = scmp.ne.s32.totalorder %s44, %s60
      %p62 = scmp.eq.s32.totalorder %s24, 0
      %p63 = por %p61, %p62
      %s65 = sadd.s32 %s64, 1
      %p68 = scmp.eq.s32.totalorder %s18, 1
      %p69 = scmp.ne.s32.totalorder %s64, %s66
      %p70 = scmp.eq.s32.totalorder %s18, 0
      %p71 = por %p69, %p70
      %p72 = scmp.ne.s32.totalorder %s64, %s66
      %p73 = scmp.eq.s32.totalorder %s23, 1
      %p74 = por %p72, %p73
      %p75 = scmp.ne.s32.totalorder %s66, %s67
      %p76 = scmp.eq.s32.totalorder %s23, 0
      %p77 = por %p75, %p76
      %p78 = scmp.ne.s32.totalorder %s66, %s67
      %p79 = scmp.eq.s32.totalorder %s24, 1
      %p80 = por %p78, %p79
      %p82 = scmp.ne.s32.totalorder %s67, %s81
      %p83 = scmp.eq.s32.totalorder %s24, 0
      %p84 = por %p82, %p83
      %s86 = sadd.s32 %s85, 1
      %p89 = scmp.eq.s32.totalorder %s18, 1
      %p90 = scmp.ne.s32.totalorder %s85, %s87
      %p91 = scmp.eq.s32.totalorder %s18, 0
      %p92 = por %p90, %p91
      %p93 = scmp.ne.s32.totalorder %s85, %s87
      %p94 = scmp.eq.s32.totalorder %s23, 1
      %p95 = por %p93, %p94
      %p96 = scmp.ne.s32.totalorder %s87, %s88
      %p97 = scmp.eq.s32.totalorder %s23, 0
      %p98 = por %p96, %p97
      %p99 = scmp.ne.s32.totalorder %s87, %s88
      %p100 = scmp.eq.s32.totalorder %s24, 1
      %p101 = por %p99, %p100
      %p103 = scmp.ne.s32.totalorder %s88, %s102
      %p104 = scmp.eq.s32.totalorder %s24, 0
      %p105 = por %p103, %p104
      %s107 = sadd.s32 %s106, 1
      %p110 = scmp.eq.s32.totalorder %s18, 1
      %p111 = scmp.ne.s32.totalorder %s106, %s108
      %p112 = scmp.eq.s32.totalorder %s18, 0
      %p113 = por %p111, %p112
      %p114 = scmp.ne.s32.totalorder %s106, %s108
      %p115 = scmp.eq.s32.totalorder %s23, 1
      %p116 = por %p114, %p115
      %p117 = scmp.ne.s32.totalorder %s108, %s109
      %p118 = scmp.eq.s32.totalorder %s23, 0
      %p119 = por %p117, %p118
      %p120 = scmp.ne.s32.totalorder %s108, %s109
      %p121 = scmp.eq.s32.totalorder %s24, 1
      %p122 = por %p120, %p121
      %p124 = scmp.ne.s32.totalorder %s109, %s123
      %p125 = scmp.eq.s32.totalorder %s24, 0
      %p126 = por %p124, %p125
      %s128 = sadd.s32 %s127, 1
      %p131 = scmp.eq.s32.totalorder %s18, 1
      %p132 = scmp.ne.s32.totalorder %s127, %s129
      %p133 = scmp.eq.s32.totalorder %s18, 0
      %p134 = por %p132, %p133
      %p135 = scmp.ne.s32.totalorder %s127, %s129
      %p136 = scmp.eq.s32.totalorder %s23, 1
      %p137 = por %p135, %p136
      %p138 = scmp.ne.s32.totalorder %s129, %s130
      %p139 = scmp.eq.s32.totalorder %s23, 0
      %p140 = por %p138, %p139
      %p141 = scmp.ne.s32.totalorder %s129, %s130
      %p142 = scmp.eq.s32.totalorder %s24, 1
      %p143 = por %p141, %p142
      %p145 = scmp.ne.s32.totalorder %s130, %s144
      %p146 = scmp.eq.s32.totalorder %s24, 0
      %p147 = por %p145, %p146
      %s149 = sadd.s32 %s148, 1
      %p152 = scmp.eq.s32.totalorder %s18, 1
      %p153 = scmp.ne.s32.totalorder %s148, %s150
      %p154 = scmp.eq.s32.totalorder %s18, 0
      %p155 = por %p153, %p154
      %p156 = scmp.ne.s32.totalorder %s148, %s150
      %p157 = scmp.eq.s32.totalorder %s23, 1
      %p158 = por %p156, %p157
      %p159 = scmp.ne.s32.totalorder %s150, %s151
      %p160 = scmp.eq.s32.totalorder %s23, 0
      %p161 = por %p159, %p160
      %p162 = scmp.ne.s32.totalorder %s150, %s151
      %p163 = scmp.eq.s32.totalorder %s24, 1
      %p164 = por %p162, %p163
      %p166 = scmp.ne.s32.totalorder %s151, %s165
      %p167 = scmp.eq.s32.totalorder %s24, 0
      %p168 = por %p166, %p167
      %s170 = sadd.s32 %s169, 1
      %p173 = scmp.eq.s32.totalorder %s18, 1
      %p174 = scmp.ne.s32.totalorder %s169, %s171
      %p175 = scmp.eq.s32.totalorder %s18, 0
      %p176 = por %p174, %p175
      %p177 = scmp.ne.s32.totalorder %s169, %s171
      %p178 = scmp.eq.s32.totalorder %s23, 1
      %p179 = por %p177, %p178
      %p180 = scmp.ne.s32.totalorder %s171, %s172
      %p181 = scmp.eq.s32.totalorder %s23, 0
      %p182 = por %p180, %p181
      %p183 = scmp.ne.s32.totalorder %s171, %s172
      %p184 = scmp.eq.s32.totalorder %s24, 1
      %p185 = por %p183, %p184
      %p187 = scmp.ne.s32.totalorder %s172, %s186
      %p188 = scmp.eq.s32.totalorder %s24, 0
      %p189 = por %p187, %p188
      %s190 = ssub.s32 %s25, %s37
      %s191 = ssub.s32 %s26, %s33
      %s192 = sor.u32 %s190, %s191
      %p193 = scmp.eq.s32.totalorder %s192, 0
      %s195 = sadd.s32 %s194, 1
      %s196 = scalar_select %p193, %s194, %s195
      %p199 = pneg %p193
      %p200 = scmp.eq.s32.totalorder %s18, 1
      %p201 = por %p199, %p200
      %p202 = scmp.ne.s32.totalorder %s194, %s197
      %p203 = scmp.eq.s32.totalorder %s18, 0
      %p204 = por %p202, %p203
      %p205 = scmp.ne.s32.totalorder %s194, %s197
      %p206 = scmp.eq.s32.totalorder %s23, 1
      %p207 = por %p205, %p206
      %p208 = scmp.ne.s32.totalorder %s197, %s198
      %p209 = scmp.eq.s32.totalorder %s23, 0
      %p210 = por %p208, %p209
      %p211 = scmp.ne.s32.totalorder %s197, %s198
      %p212 = scmp.eq.s32.totalorder %s24, 1
      %p213 = por %p211, %p212
      %p215 = scmp.ne.s32.totalorder %s198, %s214
      %p216 = scmp.eq.s32.totalorder %s24, 0
      %p217 = por %p215, %p216
      %s218 = ssub.s32 %s25, %s37
      %p219 = scmp.eq.s32.totalorder %s218, 0
      %s221 = sadd.s32 %s220, 1
      %s222 = scalar_select %p219, %s220, %s221
      %p225 = pneg %p219
      %p226 = scmp.eq.s32.totalorder %s18, 1
      %p227 = por %p225, %p226
      %p228 = scmp.ne.s32.totalorder %s220, %s223
      %p229 = scmp.eq.s32.totalorder %s18, 0
      %p230 = por %p228, %p229
      %p231 = scmp.ne.s32.totalorder %s220, %s223
      %p232 = scmp.eq.s32.totalorder %s23, 1
      %p233 = por %p231, %p232
      %p234 = scmp.ne.s32.totalorder %s223, %s224
      %p235 = scmp.eq.s32.totalorder %s23, 0
      %p236 = por %p234, %p235
      %p237 = scmp.ne.s32.totalorder %s223, %s224
      %p238 = scmp.eq.s32.totalorder %s24, 1
      %p239 = por %p237, %p238
      %p241 = scmp.ne.s32.totalorder %s224, %s240
      %p242 = scmp.eq.s32.totalorder %s24, 0
      %p243 = por %p241, %p242
      %p244 = scmp.le.s32.totalorder 1, %s18
      %p245 = scmp.lt.s32.totalorder %s18, 3
      %p246 = pnand %p244, %p245
      %p247 = pneg %p246
      // Predicated region
      $region9: #{tpu_custom_call.1} parent=5 // pred_check
        _
      $region10: #{tpu_custom_call.1} parent=5 // pred_check_branch
        %249 = sbr.rel (%p246) target = $region12
      $region11: #{tpu_custom_call.1} parent=5 // pred_region
        %s250 = ssub.s32 %s18, 1
        // Predicated region
        $region13: #{tpu_custom_call.1} parent=11 // pred_check
          %p251 = pneg %p77
        $region14: #{tpu_custom_call.1} parent=11 // pred_check_branch
          %253 = sbr.rel (%p251) target = $region16
        $region15: #{tpu_custom_call.1} parent=11 // pred_region
          _
        $region16: #{tpu_custom_call.1} parent=11 // pred_fallthru
          _
        // Predicated region
        $region17: #{tpu_custom_call.1} parent=11 // pred_check
          %p254 = pneg %p98
        $region18: #{tpu_custom_call.1} parent=11 // pred_check_branch
          %256 = sbr.rel (%p254) target = $region20
        $region19: #{tpu_custom_call.1} parent=11 // pred_region
          _
        $region20: #{tpu_custom_call.1} parent=11 // pred_fallthru
          _
        // Predicated region
        $region21: #{tpu_custom_call.1} parent=11 // pred_check
          %p257 = pneg %p119
        $region22: #{tpu_custom_call.1} parent=11 // pred_check_branch
          %259 = sbr.rel (%p257) target = $region24
        $region23: #{tpu_custom_call.1} parent=11 // pred_region
          _
        $region24: #{tpu_custom_call.1} parent=11 // pred_fallthru
          _
        // Predicated region
        $region25: #{tpu_custom_call.1} parent=11 // pred_check
          %p260 = pneg %p140
        $region26: #{tpu_custom_call.1} parent=11 // pred_check_branch
          %262 = sbr.rel (%p260) target = $region28
        $region27: #{tpu_custom_call.1} parent=11 // pred_region
          _
        $region28: #{tpu_custom_call.1} parent=11 // pred_fallthru
          _
        // Predicated region
        $region29: #{tpu_custom_call.1} parent=11 // pred_check
          %p263 = pneg %p161
        $region30: #{tpu_custom_call.1} parent=11 // pred_check_branch
          %265 = sbr.rel (%p263) target = $region32
        $region31: #{tpu_custom_call.1} parent=11 // pred_region
          _
        $region32: #{tpu_custom_call.1} parent=11 // pred_fallthru
          _
        // Predicated region
        $region33: #{tpu_custom_call.1} parent=11 // pred_check
          %p266 = pneg %p182
        $region34: #{tpu_custom_call.1} parent=11 // pred_check_branch
          %268 = sbr.rel (%p266) target = $region36
        $region35: #{tpu_custom_call.1} parent=11 // pred_region
          _
        $region36: #{tpu_custom_call.1} parent=11 // pred_fallthru
          _
      $region12: #{tpu_custom_call.1} parent=5 // pred_fallthru
        _
      %p269 = scmp.lt.s32.totalorder %s18, 2
      // Predicated region
      $region37: #{tpu_custom_call.1} parent=5 // pred_check
        %p270 = pneg %p269
      $region38: #{tpu_custom_call.1} parent=5 // pred_check_branch
        %272 = sbr.rel (%p270) target = $region40
      $region39: #{tpu_custom_call.1} parent=5 // pred_region
        // Predicated region
        $region41: #{tpu_custom_call.1} parent=39 // pred_check
          %p273 = pneg %p50
        $region42: #{tpu_custom_call.1} parent=39 // pred_check_branch
          %275 = sbr.rel (%p273) target = $region44
        $region43: #{tpu_custom_call.1} parent=39 // pred_region
          %p276 = scmp.lt.s32.totalorder %s25, 1
          %s277 = scalar_select %p276, %s25, 1
          %s278 = smul.addr %s277, 8
          %s279 = smul.addr %s278, 8
          %s280 = scalar_lea.vmem %s0, %s279
        $region44: #{tpu_custom_call.1} parent=39 // pred_fallthru
          _
      $region40: #{tpu_custom_call.1} parent=5 // pred_fallthru
        _
      %p281 = scmp.le.s32.totalorder 1, %s18
      %p282 = scmp.lt.s32.totalorder %s18, 3
      %p283 = pnand %p281, %p282
      %p284 = pneg %p283
      // Predicated region
      $region45: #{tpu_custom_call.1} parent=5 // pred_check
        _
      $region46: #{tpu_custom_call.1} parent=5 // pred_check_branch
        %286 = sbr.rel (%p283) target = $region48
      $region47: #{tpu_custom_call.1} parent=5 // pred_region
        %s287 = ssub.s32 %s18, 1
        %p288 = scmp.lt.s32.totalorder %s27, 1
        %s289 = scalar_select %p288, %s27, 1
        %s290 = smul.addr %s289, 8
        %s291 = smul.addr %s290, 8
        %s292 = scalar_lea.vmem %s0, %s291
        %p293 = pneg %p56
        %p294 = pneg %p53
        %p295 = pneg %p77
        %p296 = pneg %p74
        %p297 = pneg %p98
        %p298 = pneg %p95
        %p299 = pneg %p119
        %p300 = pneg %p116
        %p301 = pneg %p140
        %p302 = pneg %p137
        %p303 = pneg %p161
        %p304 = pneg %p158
        %p305 = pneg %p182
        %p306 = pneg %p179
        %p307 = pneg %p210
        %p308 = pneg %p207
        %s309 = sand.u32 %s197, 1
        %s310 = scalar_lea.sflag [#allocation4], %s309
        %s311 = sand.u32 %s197, 1
        %s312 = smul.addr %s311, 128
        %s313 = scalar_lea.vmem [#allocation3], %s312
        %p314 = pneg %p236
        %p315 = pneg %p233
        %p316 = scmp.lt.s32.totalorder %s27, 1
        %s317 = scalar_select %p316, %s27, 1
        %s318 = smul.addr %s317, 8
        %s319 = smul.addr %s318, 8
        %s320 = scalar_lea.vmem %s8, %s319
        %p321 = scmp.lt.s32.totalorder %s27, 1
        %s322 = scalar_select %p321, %s27, 1
        %s323 = smul.addr %s322, 8
        %s324 = smul.addr %s323, 8
        %s325 = scalar_lea.vmem %s0, %s324
        %s326 = smul.u32 8, %s28
        %p327 = scmp.lt.s32.totalorder %s27, 1
        %s328 = scalar_select %p327, %s27, 1
        %s329 = smul.addr %s328, 8
        %s330 = smul.addr %s329, 8
        %s331 = scalar_lea.vmem %s8, %s330
        %p332 = scmp.eq.s32.totalorder %s28, 0
        // Predicated region
        $region49: #{tpu_custom_call.1} parent=47 // pred_check
          %p333 = pneg %p332
        $region50: #{tpu_custom_call.1} parent=47 // pred_check_branch
          %335 = sbr.rel (%p333) target = $region52
        $region51: #{tpu_custom_call.1} parent=47 // pred_region
          %v336 = vld [vmem:[%s325] sm:$0xff]
          %v337 = vld [vmem:[%s325 + $0x8] sm:$0xff]
          %v338 = vld [vmem:[%s325 + $0x10] sm:$0xff]
          %v339 = vld [vmem:[%s325 + $0x18] sm:$0xff]
          %v340 = vld [vmem:[%s325 + $0x20] sm:$0xff]
          %v341 = vld [vmem:[%s325 + $0x28] sm:$0xff]
          %v342 = vld [vmem:[%s325 + $0x30] sm:$0xff]
          %v343 = vld [vmem:[%s325 + $0x38] sm:$0xff]
          %v344 = vld [vmem:[%s3] sm:$0xff]
          %v345 = vld [vmem:[%s3 + $0x8] sm:$0xff]
          %v346 = vld [vmem:[%s3 + $0x10] sm:$0xff]
          %v347 = vld [vmem:[%s3 + $0x18] sm:$0xff]
          %v348 = vld [vmem:[%s4] sm:$0x1]
          %v350 = vlaneseq
          %v351 = vshrl.u32 %v350, 7
          %v352 = vsub.s32 0, %v351
          %v353 = vrot.slane %v348, %v352
          %vm355 = vcmask 261120
          %v357 = vsel %vm355, %v336, 0
          %v360 = vsel %vm355, %v337, 0
          %v363 = vsel %vm355, %v338, 0
          %v366 = vsel %vm355, %v339, 0
          %v369 = vsel %vm355, %v340, 0
          %v372 = vsel %vm355, %v341, 0
          %v375 = vsel %vm355, %v342, 0
          %v378 = vsel %vm355, %v343, 0
          %380 = vmatprep.subr.mxu0 0.0
          %381 = vmatpush1.msra.mxu0 0.0
          %382 = vmatprep.subr.mxu0 0.0
          %383 = vmatpush1.msra.mxu0 0.0
          %384 = vmatprep.subr.mxu0 0.0
          %385 = vmatpush1.msra.mxu0 0.0
          %386 = vmatprep.subr.mxu0 0.0
          %387 = vmatpush1.msra.mxu0 0.0
          %388 = vmatprep.subr.mxu0 0.0
          %389 = vmatpush1.msra.mxu0 0.0
          %390 = vmatprep.subr.mxu0 0.0
          %391 = vmatpush1.msra.mxu0 0.0
          %392 = vmatprep.subr.mxu0 0.0
          %393 = vmatpush1.msra.mxu0 0.0
          %394 = vmatprep.subr.mxu0 0.0
          %395 = vmatpush1.msra.mxu0 0.0
          %396 = vmatprep.subr.mxu0 0.0
          %397 = vmatpush1.msra.mxu0 0.0
          %398 = vmatprep.subr.mxu0 0.0
          %399 = vmatpush1.msra.mxu0 0.0
          %400 = vmatprep.subr.mxu0 0.0
          %401 = vmatpush1.msra.mxu0 0.0
          %402 = vmatprep.subr.mxu0 0.0
          %403 = vmatpush1.msra.mxu0 0.0
          %404 = vmatprep.subr.mxu0 0.0
          %405 = vmatpush1.msra.mxu0 %v347
          %406 = vmatprep.subr.mxu0 0.0
          %407 = vmatpush1.msra.mxu0 %v346
          %408 = vmatprep.subr.mxu0 0.0
          %409 = vmatpush1.msra.mxu0 %v345
          %410 = vmatprep.subr.mxu0 0.0
          %411 = vmatpush1.msra.mxu0 %v344
          %412 = vmatprep.subr.mxu0 0.0
          %413 = vmatpush2.msra.mxu0 0.0
          %414 = vmatprep.subr.mxu0 0.0
          %415 = vmatpush2.msra.mxu0 0.0
          %416 = vmatprep.subr.mxu0 0.0
          %417 = vmatpush2.msra.mxu0 0.0
          %418 = vmatprep.subr.mxu0 0.0
          %419 = vmatpush2.msra.mxu0 0.0
          %420 = vmatprep.subr.mxu0 0.0
          %421 = vmatpush2.msra.mxu0 0.0
          %422 = vmatprep.subr.mxu0 0.0
          %423 = vmatpush2.msra.mxu0 0.0
          %424 = vmatprep.subr.mxu0 0.0
          %425 = vmatpush2.msra.mxu0 0.0
          %426 = vmatprep.subr.mxu0 0.0
          %427 = vmatpush2.msra.mxu0 0.0
          %428 = vmatprep.subr.mxu0 0.0
          %429 = vmatpush2.msra.mxu0 0.0
          %430 = vmatprep.subr.mxu0 0.0
          %431 = vmatpush2.msra.mxu0 0.0
          %432 = vmatprep.subr.mxu0 0.0
          %433 = vmatpush2.msra.mxu0 0.0
          %434 = vmatprep.subr.mxu0 0.0
          %435 = vmatpush2.msra.mxu0 0.0
          %436 = vmatprep.subr.mxu0 0.0
          %437 = vmatpush2.msra.mxu0 0.0
          %438 = vmatprep.subr.mxu0 0.0
          %439 = vmatpush2.msra.mxu0 0.0
          %440 = vmatprep.subr.mxu0 0.0
          %441 = vmatpush2.msra.mxu0 0.0
          %442 = vmatprep.subr.mxu0 0.0
          %443 = vmatpush2.msra.mxu0 0.0
          %444 = vmatprep.mubr.f32.mxu0 0.0
          %445 = vmatmul.mubr.f32.gmra.mxu0 %v357
          %v446 = vpop.f32.mrf.mxu0
          %v447 = vadd.f32 %v353, %v446
          %v448 = vpop.f32.mrf.mxu0
          %449 = vmatprep.mubr.f32.mxu0 0.0
          %450 = vmatmul.mubr.f32.gmra.mxu0 %v360
          %v451 = vpop.f32.mrf.mxu0
          %v452 = vadd.f32 %v353, %v451
          %v453 = vpop.f32.mrf.mxu0
          %454 = vmatprep.mubr.f32.mxu0 0.0
          %455 = vmatmul.mubr.f32.gmra.mxu0 %v363
          %v456 = vpop.f32.mrf.mxu0
          %v457 = vadd.f32 %v353, %v456
          %v458 = vpop.f32.mrf.mxu0
          %459 = vmatprep.mubr.f32.mxu0 0.0
          %460 = vmatmul.mubr.f32.gmra.mxu0 %v366
          %v461 = vpop.f32.mrf.mxu0
          %v462 = vadd.f32 %v353, %v461
          %v463 = vpop.f32.mrf.mxu0
          %464 = vmatprep.mubr.f32.mxu0 0.0
          %465 = vmatmul.mubr.f32.gmra.mxu0 %v369
          %v466 = vpop.f32.mrf.mxu0
          %v467 = vadd.f32 %v353, %v466
          %v468 = vpop.f32.mrf.mxu0
          %469 = vmatprep.mubr.f32.mxu0 0.0
          %470 = vmatmul.mubr.f32.gmra.mxu0 %v372
          %v471 = vpop.f32.mrf.mxu0
          %v472 = vadd.f32 %v353, %v471
          %v473 = vpop.f32.mrf.mxu0
          %474 = vmatprep.mubr.f32.mxu0 0.0
          %475 = vmatmul.mubr.f32.gmra.mxu0 %v375
          %v476 = vpop.f32.mrf.mxu0
          %v477 = vadd.f32 %v353, %v476
          %v478 = vpop.f32.mrf.mxu0
          %479 = vmatprep.mubr.f32.mxu0 0.0
          %480 = vmatmul.mubr.f32.gmra.mxu0 %v378
          %v481 = vpop.f32.mrf.mxu0
          %v482 = vadd.f32 %v353, %v481
          %v483 = vpop.f32.mrf.mxu0
          %484 = vdwg.mxu0
          %v485 = vld [vmem:[%s5] sm:$0xff]
          %v486 = vld [vmem:[%s5 + $0x8] sm:$0xff]
          %v487 = vld [vmem:[%s5 + $0x10] sm:$0xff]
          %v488 = vld [vmem:[%s5 + $0x18] sm:$0xff]
          %v489 = vld [vmem:[%s6] sm:$0x1]
          %v491 = vlaneseq
          %v492 = vshrl.u32 %v491, 7
          %v493 = vsub.s32 0, %v492
          %v494 = vrot.slane %v489, %v493
          %496 = vmatprep.subr.mxu0 0.0
          %497 = vmatpush1.msra.mxu0 0.0
          %498 = vmatprep.subr.mxu0 0.0
          %499 = vmatpush1.msra.mxu0 0.0
          %500 = vmatprep.subr.mxu0 0.0
          %501 = vmatpush1.msra.mxu0 0.0
          %502 = vmatprep.subr.mxu0 0.0
          %503 = vmatpush1.msra.mxu0 0.0
          %504 = vmatprep.subr.mxu0 0.0
          %505 = vmatpush1.msra.mxu0 0.0
          %506 = vmatprep.subr.mxu0 0.0
          %507 = vmatpush1.msra.mxu0 0.0
          %508 = vmatprep.subr.mxu0 0.0
          %509 = vmatpush1.msra.mxu0 0.0
          %510 = vmatprep.subr.mxu0 0.0
          %511 = vmatpush1.msra.mxu0 0.0
          %512 = vmatprep.subr.mxu0 0.0
          %513 = vmatpush1.msra.mxu0 0.0
          %514 = vmatprep.subr.mxu0 0.0
          %515 = vmatpush1.msra.mxu0 0.0
          %516 = vmatprep.subr.mxu0 0.0
          %517 = vmatpush1.msra.mxu0 0.0
          %518 = vmatprep.subr.mxu0 0.0
          %519 = vmatpush1.msra.mxu0 0.0
          %520 = vmatprep.subr.mxu0 0.0
          %521 = vmatpush1.msra.mxu0 %v488
          %522 = vmatprep.subr.mxu0 0.0
          %523 = vmatpush1.msra.mxu0 %v487
          %524 = vmatprep.subr.mxu0 0.0
          %525 = vmatpush1.msra.mxu0 %v486
          %526 = vmatprep.subr.mxu0 0.0
          %527 = vmatpush1.msra.mxu0 %v485
          %528 = vmatprep.subr.mxu0 0.0
          %529 = vmatpush2.msra.mxu0 0.0
          %530 = vmatprep.subr.mxu0 0.0
          %531 = vmatpush2.msra.mxu0 0.0
          %532 = vmatprep.subr.mxu0 0.0
          %533 = vmatpush2.msra.mxu0 0.0
          %534 = vmatprep.subr.mxu0 0.0
          %535 = vmatpush2.msra.mxu0 0.0
          %536 = vmatprep.subr.mxu0 0.0
          %537 = vmatpush2.msra.mxu0 0.0
          %538 = vmatprep.subr.mxu0 0.0
          %539 = vmatpush2.msra.mxu0 0.0
          %540 = vmatprep.subr.mxu0 0.0
          %541 = vmatpush2.msra.mxu0 0.0
          %542 = vmatprep.subr.mxu0 0.0
          %543 = vmatpush2.msra.mxu0 0.0
          %544 = vmatprep.subr.mxu0 0.0
          %545 = vmatpush2.msra.mxu0 0.0
          %546 = vmatprep.subr.mxu0 0.0
          %547 = vmatpush2.msra.mxu0 0.0
          %548 = vmatprep.subr.mxu0 0.0
          %549 = vmatpush2.msra.mxu0 0.0
          %550 = vmatprep.subr.mxu0 0.0
          %551 = vmatpush2.msra.mxu0 0.0
          %552 = vmatprep.subr.mxu0 0.0
          %553 = vmatpush2.msra.mxu0 0.0
          %554 = vmatprep.subr.mxu0 0.0
          %555 = vmatpush2.msra.mxu0 0.0
          %556 = vmatprep.subr.mxu0 0.0
          %557 = vmatpush2.msra.mxu0 0.0
          %558 = vmatprep.subr.mxu0 0.0
          %559 = vmatpush2.msra.mxu0 0.0
          %560 = vmatprep.mubr.f32.mxu0 0.0
          %561 = vmatmul.mubr.f32.gmra.mxu0 %v357
          %v562 = vpop.f32.mrf.mxu0
          %v563 = vadd.f32 %v494, %v562
          %v564 = vpop.f32.mrf.mxu0
          %565 = vmatprep.mubr.f32.mxu0 0.0
          %566 = vmatmul.mubr.f32.gmra.mxu0 %v360
          %v567 = vpop.f32.mrf.mxu0
          %v568 = vadd.f32 %v494, %v567
          %v569 = vpop.f32.mrf.mxu0
          %570 = vmatprep.mubr.f32.mxu0 0.0
          %571 = vmatmul.mubr.f32.gmra.mxu0 %v363
          %v572 = vpop.f32.mrf.mxu0
          %v573 = vadd.f32 %v494, %v572
          %v574 = vpop.f32.mrf.mxu0
          %575 = vmatprep.mubr.f32.mxu0 0.0
          %576 = vmatmul.mubr.f32.gmra.mxu0 %v366
          %v577 = vpop.f32.mrf.mxu0
          %v578 = vadd.f32 %v494, %v577
          %v579 = vpop.f32.mrf.mxu0
          %580 = vmatprep.mubr.f32.mxu0 0.0
          %581 = vmatmul.mubr.f32.gmra.mxu0 %v369
          %v582 = vpop.f32.mrf.mxu0
          %v583 = vadd.f32 %v494, %v582
          %v584 = vpop.f32.mrf.mxu0
          %585 = vmatprep.mubr.f32.mxu0 0.0
          %586 = vmatmul.mubr.f32.gmra.mxu0 %v372
          %v587 = vpop.f32.mrf.mxu0
          %v588 = vadd.f32 %v494, %v587
          %v589 = vpop.f32.mrf.mxu0
          %590 = vmatprep.mubr.f32.mxu0 0.0
          %591 = vmatmul.mubr.f32.gmra.mxu0 %v375
          %v592 = vpop.f32.mrf.mxu0
          %v593 = vadd.f32 %v494, %v592
          %v594 = vpop.f32.mrf.mxu0
          %595 = vmatprep.mubr.f32.mxu0 0.0
          %596 = vmatmul.mubr.f32.gmra.mxu0 %v378
          %v597 = vpop.f32.mrf.mxu0
          %v598 = vadd.f32 %v494, %v597
          %v599 = vpop.f32.mrf.mxu0
          %600 = vdwg.mxu0
          %601 = vst.msk [vmem:[%s331] sm:$0xff] %vm355, %v563
          %602 = vst.msk [vmem:[%s331 + $0x8] sm:$0xff] %vm355, %v568
          %603 = vst.msk [vmem:[%s331 + $0x10] sm:$0xff] %vm355, %v573
          %604 = vst.msk [vmem:[%s331 + $0x18] sm:$0xff] %vm355, %v578
          %605 = vst.msk [vmem:[%s331 + $0x20] sm:$0xff] %vm355, %v583
          %606 = vst.msk [vmem:[%s331 + $0x28] sm:$0xff] %vm355, %v588
          %607 = vst.msk [vmem:[%s331 + $0x30] sm:$0xff] %vm355, %v593
          %608 = vst.msk [vmem:[%s331 + $0x38] sm:$0xff] %vm355, %v598
          %vm609 = vcmask 130048
          %610 = vst.msk [vmem:[#allocation2] sm:$0xff] %vm609, %v447
          %611 = vst.msk [vmem:[#allocation2 + $0x8] sm:$0xff] %vm609, %v452
          %612 = vst.msk [vmem:[#allocation2 + $0x10] sm:$0xff] %vm609, %v457
          %613 = vst.msk [vmem:[#allocation2 + $0x18] sm:$0xff] %vm609, %v462
          %614 = vst.msk [vmem:[#allocation2 + $0x20] sm:$0xff] %vm609, %v467
          %615 = vst.msk [vmem:[#allocation2 + $0x28] sm:$0xff] %vm609, %v472
          %616 = vst.msk [vmem:[#allocation2 + $0x30] sm:$0xff] %vm609, %v477
          %617 = vst.msk [vmem:[#allocation2 + $0x38] sm:$0xff] %vm609, %v482
          %626 = vrot.lane.b32.xlu0 %v447, 112
          %v627 = vpop.permute.xlu0 %626
          %628 = vrot.lane.b32.xlu0 %v452, 112
          %v629 = vpop.permute.xlu0 %628
          %630 = vrot.lane.b32.xlu0 %v457, 112
          %v631 = vpop.permute.xlu0 %630
          %632 = vrot.lane.b32.xlu0 %v462, 112
          %v633 = vpop.permute.xlu0 %632
          %634 = vrot.lane.b32.xlu0 %v467, 112
          %v635 = vpop.permute.xlu0 %634
          %636 = vrot.lane.b32.xlu0 %v472, 112
          %v637 = vpop.permute.xlu0 %636
          %638 = vrot.lane.b32.xlu0 %v477, 112
          %v639 = vpop.permute.xlu0 %638
          %640 = vrot.lane.b32.xlu0 %v482, 112
          %v641 = vpop.permute.xlu0 %640
          %s650 = scalar_lea.vmem [#allocation2], 64
          %651 = vst.msk [vmem:[%s650] sm:$0xff] %vm609, %v627
          %652 = vst.msk [vmem:[%s650 + $0x8] sm:$0xff] %vm609, %v629
          %653 = vst.msk [vmem:[%s650 + $0x10] sm:$0xff] %vm609, %v631
          %654 = vst.msk [vmem:[%s650 + $0x18] sm:$0xff] %vm609, %v633
          %655 = vst.msk [vmem:[%s650 + $0x20] sm:$0xff] %vm609, %v635
          %656 = vst.msk [vmem:[%s650 + $0x28] sm:$0xff] %vm609, %v637
          %657 = vst.msk [vmem:[%s650 + $0x30] sm:$0xff] %vm609, %v639
          %658 = vst.msk [vmem:[%s650 + $0x38] sm:$0xff] %vm609, %v641
        $region52: #{tpu_custom_call.1} parent=47 // pred_fallthru
          _
        %s659 = smul.u32 %s28, 64
        %s660 = scalar_lea.vmem %s325, %s659
        %v661 = vld [vmem:[%s660] sm:$0xff]
        %v662 = vld [vmem:[%s660 + $0x8] sm:$0xff]
        %v663 = vld [vmem:[%s660 + $0x10] sm:$0xff]
        %v664 = vld [vmem:[%s660 + $0x18] sm:$0xff]
        %v665 = vld [vmem:[%s660 + $0x20] sm:$0xff]
        %v666 = vld [vmem:[%s660 + $0x28] sm:$0xff]
        %v667 = vld [vmem:[%s660 + $0x30] sm:$0xff]
        %v668 = vld [vmem:[%s660 + $0x38] sm:$0xff]
        %v669 = vld [vmem:[%s1] sm:$0xff]
        %v670 = vld [vmem:[%s1 + $0x8] sm:$0xff]
        %v671 = vld [vmem:[%s1 + $0x10] sm:$0xff]
        %v672 = vld [vmem:[%s1 + $0x18] sm:$0xff]
        %v673 = vld [vmem:[%s2] sm:$0x1]
        %v675 = vlaneseq
        %v676 = vshrl.u32 %v675, 7
        %v677 = vsub.s32 0, %v676
        %v678 = vrot.slane %v673, %v677
        %vm680 = vcmask 261120
        %v682 = vsel %vm680, %v661, 0
        %v685 = vsel %vm680, %v662, 0
        %v688 = vsel %vm680, %v663, 0
        %v691 = vsel %vm680, %v664, 0
        %v694 = vsel %vm680, %v665, 0
        %v697 = vsel %vm680, %v666, 0
        %v700 = vsel %vm680, %v667, 0
        %v703 = vsel %vm680, %v668, 0
        %705 = vmatprep.subr.mxu0 0.0
        %706 = vmatpush1.msra.mxu0 0.0
        %707 = vmatprep.subr.mxu0 0.0
        %708 = vmatpush1.msra.mxu0 0.0
        %709 = vmatprep.subr.mxu0 0.0
        %710 = vmatpush1.msra.mxu0 0.0
        %711 = vmatprep.subr.mxu0 0.0
        %712 = vmatpush1.msra.mxu0 0.0
        %713 = vmatprep.subr.mxu0 0.0
        %714 = vmatpush1.msra.mxu0 0.0
        %715 = vmatprep.subr.mxu0 0.0
        %716 = vmatpush1.msra.mxu0 0.0
        %717 = vmatprep.subr.mxu0 0.0
        %718 = vmatpush1.msra.mxu0 0.0
        %719 = vmatprep.subr.mxu0 0.0
        %720 = vmatpush1.msra.mxu0 0.0
        %721 = vmatprep.subr.mxu0 0.0
        %722 = vmatpush1.msra.mxu0 0.0
        %723 = vmatprep.subr.mxu0 0.0
        %724 = vmatpush1.msra.mxu0 0.0
        %725 = vmatprep.subr.mxu0 0.0
        %726 = vmatpush1.msra.mxu0 0.0
        %727 = vmatprep.subr.mxu0 0.0
        %728 = vmatpush1.msra.mxu0 0.0
        %729 = vmatprep.subr.mxu0 0.0
        %730 = vmatpush1.msra.mxu0 %v672
        %731 = vmatprep.subr.mxu0 0.0
        %732 = vmatpush1.msra.mxu0 %v671
        %733 = vmatprep.subr.mxu0 0.0
        %734 = vmatpush1.msra.mxu0 %v670
        %735 = vmatprep.subr.mxu0 0.0
        %736 = vmatpush1.msra.mxu0 %v669
        %737 = vmatprep.subr.mxu0 0.0
        %738 = vmatpush2.msra.mxu0 0.0
        %739 = vmatprep.subr.mxu0 0.0
        %740 = vmatpush2.msra.mxu0 0.0
        %741 = vmatprep.subr.mxu0 0.0
        %742 = vmatpush2.msra.mxu0 0.0
        %743 = vmatprep.subr.mxu0 0.0
        %744 = vmatpush2.msra.mxu0 0.0
        %745 = vmatprep.subr.mxu0 0.0
        %746 = vmatpush2.msra.mxu0 0.0
        %747 = vmatprep.subr.mxu0 0.0
        %748 = vmatpush2.msra.mxu0 0.0
        %749 = vmatprep.subr.mxu0 0.0
        %750 = vmatpush2.msra.mxu0 0.0
        %751 = vmatprep.subr.mxu0 0.0
        %752 = vmatpush2.msra.mxu0 0.0
        %753 = vmatprep.subr.mxu0 0.0
        %754 = vmatpush2.msra.mxu0 0.0
        %755 = vmatprep.subr.mxu0 0.0
        %756 = vmatpush2.msra.mxu0 0.0
        %757 = vmatprep.subr.mxu0 0.0
        %758 = vmatpush2.msra.mxu0 0.0
        %759 = vmatprep.subr.mxu0 0.0
        %760 = vmatpush2.msra.mxu0 0.0
        %761 = vmatprep.subr.mxu0 0.0
        %762 = vmatpush2.msra.mxu0 0.0
        %763 = vmatprep.subr.mxu0 0.0
        %764 = vmatpush2.msra.mxu0 0.0
        %765 = vmatprep.subr.mxu0 0.0
        %766 = vmatpush2.msra.mxu0 0.0
        %767 = vmatprep.subr.mxu0 0.0
        %768 = vmatpush2.msra.mxu0 0.0
        %769 = vmatprep.mubr.f32.mxu0 0.0
        %770 = vmatmul.mubr.f32.gmra.mxu0 %v682
        %v771 = vpop.f32.mrf.mxu0
        %v772 = vadd.f32 %v678, %v771
        %v773 = vpop.f32.mrf.mxu0
        %774 = vmatprep.mubr.f32.mxu0 0.0
        %775 = vmatmul.mubr.f32.gmra.mxu0 %v685
        %v776 = vpop.f32.mrf.mxu0
        %v777 = vadd.f32 %v678, %v776
        %v778 = vpop.f32.mrf.mxu0
        %779 = vmatprep.mubr.f32.mxu0 0.0
        %780 = vmatmul.mubr.f32.gmra.mxu0 %v688
        %v781 = vpop.f32.mrf.mxu0
        %v782 = vadd.f32 %v678, %v781
        %v783 = vpop.f32.mrf.mxu0
        %784 = vmatprep.mubr.f32.mxu0 0.0
        %785 = vmatmul.mubr.f32.gmra.mxu0 %v691
        %v786 = vpop.f32.mrf.mxu0
        %v787 = vadd.f32 %v678, %v786
        %v788 = vpop.f32.mrf.mxu0
        %789 = vmatprep.mubr.f32.mxu0 0.0
        %790 = vmatmul.mubr.f32.gmra.mxu0 %v694
        %v791 = vpop.f32.mrf.mxu0
        %v792 = vadd.f32 %v678, %v791
        %v793 = vpop.f32.mrf.mxu0
        %794 = vmatprep.mubr.f32.mxu0 0.0
        %795 = vmatmul.mubr.f32.gmra.mxu0 %v697
        %v796 = vpop.f32.mrf.mxu0
        %v797 = vadd.f32 %v678, %v796
        %v798 = vpop.f32.mrf.mxu0
        %799 = vmatprep.mubr.f32.mxu0 0.0
        %800 = vmatmul.mubr.f32.gmra.mxu0 %v700
        %v801 = vpop.f32.mrf.mxu0
        %v802 = vadd.f32 %v678, %v801
        %v803 = vpop.f32.mrf.mxu0
        %804 = vmatprep.mubr.f32.mxu0 0.0
        %805 = vmatmul.mubr.f32.gmra.mxu0 %v703
        %v806 = vpop.f32.mrf.mxu0
        %v807 = vadd.f32 %v678, %v806
        %v808 = vpop.f32.mrf.mxu0
        %809 = vdwg.mxu0
        %v810 = vmul.f32 %v772, 0.25
        %v811 = vmul.f32 %v777, 0.25
        %v812 = vmul.f32 %v782, 0.25
        %v813 = vmul.f32 %v787, 0.25
        %v814 = vmul.f32 %v792, 0.25
        %v815 = vmul.f32 %v797, 0.25
        %v816 = vmul.f32 %v802, 0.25
        %v817 = vmul.f32 %v807, 0.25
        %v818 = vld [vmem:[#allocation2] sm:$0xff]
        %v819 = vld [vmem:[#allocation2 + $0x8] sm:$0xff]
        %v820 = vld [vmem:[#allocation2 + $0x10] sm:$0xff]
        %v821 = vld [vmem:[#allocation2 + $0x18] sm:$0xff]
        %v822 = vld [vmem:[#allocation2 + $0x20] sm:$0xff]
        %v823 = vld [vmem:[#allocation2 + $0x28] sm:$0xff]
        %v824 = vld [vmem:[#allocation2 + $0x30] sm:$0xff]
        %v825 = vld [vmem:[#allocation2 + $0x38] sm:$0xff]
        %vm826 = vcmask 130048
        %v828 = vsel %vm826, %v810, 0
        %v831 = vsel %vm826, %v811, 0
        %v834 = vsel %vm826, %v812, 0
        %v837 = vsel %vm826, %v813, 0
        %v840 = vsel %vm826, %v814, 0
        %v843 = vsel %vm826, %v815, 0
        %v846 = vsel %vm826, %v816, 0
        %v849 = vsel %vm826, %v817, 0
        %v852 = vsel %vm826, %v818, 0
        %v855 = vsel %vm826, %v819, 0
        %v858 = vsel %vm826, %v820, 0
        %v861 = vsel %vm826, %v821, 0
        %v864 = vsel %vm826, %v822, 0
        %v867 = vsel %vm826, %v823, 0
        %v870 = vsel %vm826, %v824, 0
        %v873 = vsel %vm826, %v825, 0
        %875 = vmatprep.subr.mxu0 0.0
        %876 = vmatpush1.xpose.msra.mxu0 0.0
        %877 = vmatprep.subr.mxu0 0.0
        %878 = vmatpush1.xpose.msra.mxu0 0.0
        %879 = vmatprep.subr.mxu0 0.0
        %880 = vmatpush1.xpose.msra.mxu0 0.0
        %881 = vmatprep.subr.mxu0 0.0
        %882 = vmatpush1.xpose.msra.mxu0 0.0
        %883 = vmatprep.subr.mxu0 0.0
        %884 = vmatpush1.xpose.msra.mxu0 0.0
        %885 = vmatprep.subr.mxu0 0.0
        %886 = vmatpush1.xpose.msra.mxu0 0.0
        %887 = vmatprep.subr.mxu0 0.0
        %888 = vmatpush1.xpose.msra.mxu0 0.0
        %889 = vmatprep.subr.mxu0 0.0
        %890 = vmatpush1.xpose.msra.mxu0 0.0
        %891 = vmatprep.subr.mxu0 0.0
        %892 = vmatpush1.xpose.msra.mxu0 %v873
        %893 = vmatprep.subr.mxu0 0.0
        %894 = vmatpush1.xpose.msra.mxu0 %v870
        %895 = vmatprep.subr.mxu0 0.0
        %896 = vmatpush1.xpose.msra.mxu0 %v867
        %897 = vmatprep.subr.mxu0 0.0
        %898 = vmatpush1.xpose.msra.mxu0 %v864
        %899 = vmatprep.subr.mxu0 0.0
        %900 = vmatpush1.xpose.msra.mxu0 %v861
        %901 = vmatprep.subr.mxu0 0.0
        %902 = vmatpush1.xpose.msra.mxu0 %v858
        %903 = vmatprep.subr.mxu0 0.0
        %904 = vmatpush1.xpose.msra.mxu0 %v855
        %905 = vmatprep.subr.mxu0 0.0
        %906 = vmatpush1.xpose.msra.mxu0 %v852
        %907 = vmatprep.subr.mxu0 0.0
        %908 = vmatpush2.xpose.msra.mxu0 0.0
        %909 = vmatprep.subr.mxu0 0.0
        %910 = vmatpush2.xpose.msra.mxu0 0.0
        %911 = vmatprep.subr.mxu0 0.0
        %912 = vmatpush2.xpose.msra.mxu0 0.0
        %913 = vmatprep.subr.mxu0 0.0
        %914 = vmatpush2.xpose.msra.mxu0 0.0
        %915 = vmatprep.subr.mxu0 0.0
        %916 = vmatpush2.xpose.msra.mxu0 0.0
        %917 = vmatprep.subr.mxu0 0.0
        %918 = vmatpush2.xpose.msra.mxu0 0.0
        %919 = vmatprep.subr.mxu0 0.0
        %920 = vmatpush2.xpose.msra.mxu0 0.0
        %921 = vmatprep.subr.mxu0 0.0
        %922 = vmatpush2.xpose.msra.mxu0 0.0
        %923 = vmatprep.subr.mxu0 0.0
        %924 = vmatpush2.xpose.msra.mxu0 0.0
        %925 = vmatprep.subr.mxu0 0.0
        %926 = vmatpush2.xpose.msra.mxu0 0.0
        %927 = vmatprep.subr.mxu0 0.0
        %928 = vmatpush2.xpose.msra.mxu0 0.0
        %929 = vmatprep.subr.mxu0 0.0
        %930 = vmatpush2.xpose.msra.mxu0 0.0
        %931 = vmatprep.subr.mxu0 0.0
        %932 = vmatpush2.xpose.msra.mxu0 0.0
        %933 = vmatprep.subr.mxu0 0.0
        %934 = vmatpush2.xpose.msra.mxu0 0.0
        %935 = vmatprep.subr.mxu0 0.0
        %936 = vmatpush2.xpose.msra.mxu0 0.0
        %937 = vmatprep.subr.mxu0 0.0
        %938 = vmatpush2.xpose.msra.mxu0 0.0
        %939 = vmatprep.mubr.f32.mxu0 0.0
        %940 = vmatmul.mubr.f32.gmra.mxu0 %v828
        %v941 = vpop.f32.mrf.mxu0
        %v942 = vadd.f32 0.0, %v941
        %v943 = vpop.f32.mrf.mxu0
        %944 = vmatprep.mubr.f32.mxu0 0.0
        %945 = vmatmul.mubr.f32.gmra.mxu0 %v831
        %v946 = vpop.f32.mrf.mxu0
        %v947 = vadd.f32 0.0, %v946
        %v948 = vpop.f32.mrf.mxu0
        %949 = vmatprep.mubr.f32.mxu0 0.0
        %950 = vmatmul.mubr.f32.gmra.mxu0 %v834
        %v951 = vpop.f32.mrf.mxu0
        %v952 = vadd.f32 0.0, %v951
        %v953 = vpop.f32.mrf.mxu0
        %954 = vmatprep.mubr.f32.mxu0 0.0
        %955 = vmatmul.mubr.f32.gmra.mxu0 %v837
        %v956 = vpop.f32.mrf.mxu0
        %v957 = vadd.f32 0.0, %v956
        %v958 = vpop.f32.mrf.mxu0
        %959 = vmatprep.mubr.f32.mxu0 0.0
        %960 = vmatmul.mubr.f32.gmra.mxu0 %v840
        %v961 = vpop.f32.mrf.mxu0
        %v962 = vadd.f32 0.0, %v961
        %v963 = vpop.f32.mrf.mxu0
        %964 = vmatprep.mubr.f32.mxu0 0.0
        %965 = vmatmul.mubr.f32.gmra.mxu0 %v843
        %v966 = vpop.f32.mrf.mxu0
        %v967 = vadd.f32 0.0, %v966
        %v968 = vpop.f32.mrf.mxu0
        %969 = vmatprep.mubr.f32.mxu0 0.0
        %970 = vmatmul.mubr.f32.gmra.mxu0 %v846
        %v971 = vpop.f32.mrf.mxu0
        %v972 = vadd.f32 0.0, %v971
        %v973 = vpop.f32.mrf.mxu0
        %974 = vmatprep.mubr.f32.mxu0 0.0
        %975 = vmatmul.mubr.f32.gmra.mxu0 %v849
        %v976 = vpop.f32.mrf.mxu0
        %v977 = vadd.f32 0.0, %v976
        %v978 = vpop.f32.mrf.mxu0
        %979 = vdwg.mxu0
        %vm980 = vcmask 523264
        %981 = vst.msk [vmem:[%s313] sm:$0xff] %vm980, %v942
        %982 = vst.msk [vmem:[%s313 + $0x8] sm:$0xff] %vm980, %v947
        %983 = vst.msk [vmem:[%s313 + $0x10] sm:$0xff] %vm980, %v952
        %984 = vst.msk [vmem:[%s313 + $0x18] sm:$0xff] %vm980, %v957
        %985 = vst.msk [vmem:[%s313 + $0x20] sm:$0xff] %vm980, %v962
        %986 = vst.msk [vmem:[%s313 + $0x28] sm:$0xff] %vm980, %v967
        %987 = vst.msk [vmem:[%s313 + $0x30] sm:$0xff] %vm980, %v972
        %988 = vst.msk [vmem:[%s313 + $0x38] sm:$0xff] %vm980, %v977
        %s989 = scalar_lea.vmem [#allocation2], 64
        %v990 = vld [vmem:[%s989] sm:$0xff]
        %v991 = vld [vmem:[%s989 + $0x8] sm:$0xff]
        %v992 = vld [vmem:[%s989 + $0x10] sm:$0xff]
        %v993 = vld [vmem:[%s989 + $0x18] sm:$0xff]
        %v994 = vld [vmem:[%s989 + $0x20] sm:$0xff]
        %v995 = vld [vmem:[%s989 + $0x28] sm:$0xff]
        %v996 = vld [vmem:[%s989 + $0x30] sm:$0xff]
        %v997 = vld [vmem:[%s989 + $0x38] sm:$0xff]
        %998 = vrot.lane.b32.xlu0 %v810, 112
        %v999 = vpop.permute.xlu0 %998
        %1000 = vrot.lane.b32.xlu0 %v811, 112
        %v1001 = vpop.permute.xlu0 %1000
        %1002 = vrot.lane.b32.xlu0 %v812, 112
        %v1003 = vpop.permute.xlu0 %1002
        %1004 = vrot.lane.b32.xlu0 %v813, 112
        %v1005 = vpop.permute.xlu0 %1004
        %1006 = vrot.lane.b32.xlu0 %v814, 112
        %v1007 = vpop.permute.xlu0 %1006
        %1008 = vrot.lane.b32.xlu0 %v815, 112
        %v1009 = vpop.permute.xlu0 %1008
        %1010 = vrot.lane.b32.xlu0 %v816, 112
        %v1011 = vpop.permute.xlu0 %1010
        %1012 = vrot.lane.b32.xlu0 %v817, 112
        %v1013 = vpop.permute.xlu0 %1012
        %v1014 = vsel %vm826, %v999, 0
        %v1016 = vsel %vm826, %v1001, 0
        %v1018 = vsel %vm826, %v1003, 0
        %v1020 = vsel %vm826, %v1005, 0
        %v1022 = vsel %vm826, %v1007, 0
        %v1024 = vsel %vm826, %v1009, 0
        %v1026 = vsel %vm826, %v1011, 0
        %v1028 = vsel %vm826, %v1013, 0
        %v1031 = vsel %vm826, %v990, 0
        %v1034 = vsel %vm826, %v991, 0
        %v1037 = vsel %vm826, %v992, 0
        %v1040 = vsel %vm826, %v993, 0
        %v1043 = vsel %vm826, %v994, 0
        %v1046 = vsel %vm826, %v995, 0
        %v1049 = vsel %vm826, %v996, 0
        %v1052 = vsel %vm826, %v997, 0
        %1054 = vmatprep.subr.mxu0 0.0
        %1055 = vmatpush1.xpose.msra.mxu0 0.0
        %1056 = vmatprep.subr.mxu0 0.0
        %1057 = vmatpush1.xpose.msra.mxu0 0.0
        %1058 = vmatprep.subr.mxu0 0.0
        %1059 = vmatpush1.xpose.msra.mxu0 0.0
        %1060 = vmatprep.subr.mxu0 0.0
        %1061 = vmatpush1.xpose.msra.mxu0 0.0
        %1062 = vmatprep.subr.mxu0 0.0
        %1063 = vmatpush1.xpose.msra.mxu0 0.0
        %1064 = vmatprep.subr.mxu0 0.0
        %1065 = vmatpush1.xpose.msra.mxu0 0.0
        %1066 = vmatprep.subr.mxu0 0.0
        %1067 = vmatpush1.xpose.msra.mxu0 0.0
        %1068 = vmatprep.subr.mxu0 0.0
        %1069 = vmatpush1.xpose.msra.mxu0 0.0
        %1070 = vmatprep.subr.mxu0 0.0
        %1071 = vmatpush1.xpose.msra.mxu0 %v1052
        %1072 = vmatprep.subr.mxu0 0.0
        %1073 = vmatpush1.xpose.msra.mxu0 %v1049
        %1074 = vmatprep.subr.mxu0 0.0
        %1075 = vmatpush1.xpose.msra.mxu0 %v1046
        %1076 = vmatprep.subr.mxu0 0.0
        %1077 = vmatpush1.xpose.msra.mxu0 %v1043
        %1078 = vmatprep.subr.mxu0 0.0
        %1079 = vmatpush1.xpose.msra.mxu0 %v1040
        %1080 = vmatprep.subr.mxu0 0.0
        %1081 = vmatpush1.xpose.msra.mxu0 %v1037
        %1082 = vmatprep.subr.mxu0 0.0
        %1083 = vmatpush1.xpose.msra.mxu0 %v1034
        %1084 = vmatprep.subr.mxu0 0.0
        %1085 = vmatpush1.xpose.msra.mxu0 %v1031
        %1086 = vmatprep.subr.mxu0 0.0
        %1087 = vmatpush2.xpose.msra.mxu0 0.0
        %1088 = vmatprep.subr.mxu0 0.0
        %1089 = vmatpush2.xpose.msra.mxu0 0.0
        %1090 = vmatprep.subr.mxu0 0.0
        %1091 = vmatpush2.xpose.msra.mxu0 0.0
        %1092 = vmatprep.subr.mxu0 0.0
        %1093 = vmatpush2.xpose.msra.mxu0 0.0
        %1094 = vmatprep.subr.mxu0 0.0
        %1095 = vmatpush2.xpose.msra.mxu0 0.0
        %1096 = vmatprep.subr.mxu0 0.0
        %1097 = vmatpush2.xpose.msra.mxu0 0.0
        %1098 = vmatprep.subr.mxu0 0.0
        %1099 = vmatpush2.xpose.msra.mxu0 0.0
        %1100 = vmatprep.subr.mxu0 0.0
        %1101 = vmatpush2.xpose.msra.mxu0 0.0
        %1102 = vmatprep.subr.mxu0 0.0
        %1103 = vmatpush2.xpose.msra.mxu0 0.0
        %1104 = vmatprep.subr.mxu0 0.0
        %1105 = vmatpush2.xpose.msra.mxu0 0.0
        %1106 = vmatprep.subr.mxu0 0.0
        %1107 = vmatpush2.xpose.msra.mxu0 0.0
        %1108 = vmatprep.subr.mxu0 0.0
        %1109 = vmatpush2.xpose.msra.mxu0 0.0
        %1110 = vmatprep.subr.mxu0 0.0
        %1111 = vmatpush2.xpose.msra.mxu0 0.0
        %1112 = vmatprep.subr.mxu0 0.0
        %1113 = vmatpush2.xpose.msra.mxu0 0.0
        %1114 = vmatprep.subr.mxu0 0.0
        %1115 = vmatpush2.xpose.msra.mxu0 0.0
        %1116 = vmatprep.subr.mxu0 0.0
        %1117 = vmatpush2.xpose.msra.mxu0 0.0
        %1118 = vmatprep.mubr.f32.mxu0 0.0
        %1119 = vmatmul.mubr.f32.gmra.mxu0 %v1014
        %v1120 = vpop.f32.mrf.mxu0
        %v1121 = vadd.f32 0.0, %v1120
        %v1122 = vpop.f32.mrf.mxu0
        %1123 = vmatprep.mubr.f32.mxu0 0.0
        %1124 = vmatmul.mubr.f32.gmra.mxu0 %v1016
        %v1125 = vpop.f32.mrf.mxu0
        %v1126 = vadd.f32 0.0, %v1125
        %v1127 = vpop.f32.mrf.mxu0
        %1128 = vmatprep.mubr.f32.mxu0 0.0
        %1129 = vmatmul.mubr.f32.gmra.mxu0 %v1018
        %v1130 = vpop.f32.mrf.mxu0
        %v1131 = vadd.f32 0.0, %v1130
        %v1132 = vpop.f32.mrf.mxu0
        %1133 = vmatprep.mubr.f32.mxu0 0.0
        %1134 = vmatmul.mubr.f32.gmra.mxu0 %v1020
        %v1135 = vpop.f32.mrf.mxu0
        %v1136 = vadd.f32 0.0, %v1135
        %v1137 = vpop.f32.mrf.mxu0
        %1138 = vmatprep.mubr.f32.mxu0 0.0
        %1139 = vmatmul.mubr.f32.gmra.mxu0 %v1022
        %v1140 = vpop.f32.mrf.mxu0
        %v1141 = vadd.f32 0.0, %v1140
        %v1142 = vpop.f32.mrf.mxu0
        %1143 = vmatprep.mubr.f32.mxu0 0.0
        %1144 = vmatmul.mubr.f32.gmra.mxu0 %v1024
        %v1145 = vpop.f32.mrf.mxu0
        %v1146 = vadd.f32 0.0, %v1145
        %v1147 = vpop.f32.mrf.mxu0
        %1148 = vmatprep.mubr.f32.mxu0 0.0
        %1149 = vmatmul.mubr.f32.gmra.mxu0 %v1026
        %v1150 = vpop.f32.mrf.mxu0
        %v1151 = vadd.f32 0.0, %v1150
        %v1152 = vpop.f32.mrf.mxu0
        %1153 = vmatprep.mubr.f32.mxu0 0.0
        %1154 = vmatmul.mubr.f32.gmra.mxu0 %v1028
        %v1155 = vpop.f32.mrf.mxu0
        %v1156 = vadd.f32 0.0, %v1155
        %v1157 = vpop.f32.mrf.mxu0
        %1158 = vdwg.mxu0
        %s1159 = scalar_lea.vmem %s313, 64 [#allocation3]
        %1160 = vst.msk [vmem:[%s1159] sm:$0xff] %vm980, %v1121
        %1161 = vst.msk [vmem:[%s1159 + $0x8] sm:$0xff] %vm980, %v1126
        %1162 = vst.msk [vmem:[%s1159 + $0x10] sm:$0xff] %vm980, %v1131
        %1163 = vst.msk [vmem:[%s1159 + $0x18] sm:$0xff] %vm980, %v1136
        %1164 = vst.msk [vmem:[%s1159 + $0x20] sm:$0xff] %vm980, %v1141
        %1165 = vst.msk [vmem:[%s1159 + $0x28] sm:$0xff] %vm980, %v1146
        %1166 = vst.msk [vmem:[%s1159 + $0x30] sm:$0xff] %vm980, %v1151
        %1167 = vst.msk [vmem:[%s1159 + $0x38] sm:$0xff] %vm980, %v1156
        %s1168 = sand.u32 %s197, 1
        %s1169 = scalar_lea.sflag [#allocation4], %s1168
        %s1170 = sand.u32 %s197, 1
        %s1171 = smul.addr %s1170, 128
        %s1172 = scalar_lea.vmem [#allocation3], %s1171
        %p1173 = scmp.lt.s32.totalorder %s27, 1
        %s1174 = scalar_select %p1173, %s27, 1
        %s1175 = smul.addr %s1174, 8
        %s1176 = smul.addr %s1175, 8
        %s1177 = scalar_lea.vmem %s8, %s1176
        // Predicated region
        $region53: #{tpu_custom_call.1} parent=47 // pred_check
          %p1178 = pneg %p207
        $region54: #{tpu_custom_call.1} parent=47 // pred_check_branch
          %1180 = sbr.rel (%p1178) target = $region56
        $region55: #{tpu_custom_call.1} parent=47 // pred_region
          %s1181 = smul.u32 8, %s28
          %s1183 = ssub.s32 2048, 2048
          %1184 = vsyncadd %s1169, %s1183
          %s1185 = smul.addr %s27, 16
          %s1186 = sadd.s32 %s1181, %s1185
          %s1187 = smul.addr %s1186, 128
          %s1188 = scalar_lea.hbm %s7, %s1187
          %s1189 = sshll.u32 %s1172, 4
          %s1190 = int_to_ptr.vmem [resolvable:$true] %s1189
          %1195 = dma.vmem_to_hbm [thread:$0]  %s1190, 2048, %s1188, %s1169, 128, 128, 8
        $region56: #{tpu_custom_call.1} parent=47 // pred_fallthru
          _
        // Predicated region
        $region57: #{tpu_custom_call.1} parent=47 // pred_check
          %p1196 = pneg %p233
        $region58: #{tpu_custom_call.1} parent=47 // pred_check_branch
          %1198 = sbr.rel (%p1196) target = $region60
        $region59: #{tpu_custom_call.1} parent=47 // pred_region
          _
        $region60: #{tpu_custom_call.1} parent=47 // pred_fallthru
          _
      $region48: #{tpu_custom_call.1} parent=5 // pred_fallthru
        _
      %p1199 = scmp.le.s32.totalorder 2, %s18
      // Predicated region
      $region61: #{tpu_custom_call.1} parent=5 // pred_check
        %p1200 = pneg %p1199
      $region62: #{tpu_custom_call.1} parent=5 // pred_check_branch
        %1202 = sbr.rel (%p1200) target = $region64
      $region63: #{tpu_custom_call.1} parent=5 // pred_region
        %s1203 = ssub.s32 %s18, 2
        // Predicated region
        $region65: #{tpu_custom_call.1} parent=63 // pred_check
          %p1204 = pneg %p213
        $region66: #{tpu_custom_call.1} parent=63 // pred_check_branch
          %1206 = sbr.rel (%p1204) target = $region68
        $region67: #{tpu_custom_call.1} parent=63 // pred_region
          %s1207 = sand.u32 %s198, 1
          %s1208 = scalar_lea.sflag [#allocation4], %s1207
          %s1209 = sand.u32 %s198, 1
          %s1210 = smul.addr %s1209, 128
          %s1211 = scalar_lea.vmem [#allocation3], %s1210
          %1212 = dma.done %s1208, 2048
        $region68: #{tpu_custom_call.1} parent=63 // pred_fallthru
          _
        // Predicated region
        $region69: #{tpu_custom_call.1} parent=63 // pred_check
          %p1213 = pneg %p239
        $region70: #{tpu_custom_call.1} parent=63 // pred_check_branch
          %1215 = sbr.rel (%p1213) target = $region72
        $region71: #{tpu_custom_call.1} parent=63 // pred_region
          %p1216 = scmp.lt.s32.totalorder %s29, 1
          %s1217 = scalar_select %p1216, %s29, 1
          %s1218 = smul.addr %s1217, 8
          %s1219 = smul.addr %s1218, 8
          %s1220 = scalar_lea.vmem %s8, %s1219
        $region72: #{tpu_custom_call.1} parent=63 // pred_fallthru
          _
      $region64: #{tpu_custom_call.1} parent=5 // pred_fallthru
        _
    $region6: #{tpu_custom_call.1} parent=1 // loop_footer
      %s22 = sadd.s32 1, %s18
    $region7: #{tpu_custom_call.1} parent=1 // loop_footer_branch
      %17 = sbr.rel target = $region3
    $region8: #{tpu_custom_call.1} parent=1 // loop_exit
      _
    %1221 = vsyncpa [#allocation4], 1
    %s1222 = scalar_lea.sflag [#allocation4], 1
    %1223 = vsyncpa %s1222, 1

</llo_original>
